<compile_context>
chip_gen: v7x
topology: tpu7x:2x2x1
jax: 0.10.0
libtpu: 0.0.40
codegen_flags: <defaults>
</compile_context>

<pallas_src>
import jax
import jax.numpy as jnp
from jax.experimental import pallas as pl
from jax.experimental.pallas import tpu as pltpu

_LANE = 128
_TARGET_BLOCK_BYTES = 2 << 20  # ~2 MiB input block -> ~8 MiB with in+out double-buffer


def _hardswish_kernel(x_ref, o_ref):
    # Upcast to f32 for the arithmetic (no-op for f32 inputs, avoids bf16 VALU
    # issues on v5e), then cast back to the output dtype.
    x = x_ref[...].astype(jnp.float32)
    hs = jnp.clip(x + 3.0, 0.0, 6.0) * (1.0 / 6.0)  # hard_sigmoid
    o_ref[...] = (x * hs).astype(o_ref.dtype)


def _choose_lane_width(n):
    """Widest lane dim (multiple of 128) that divides n; else 128 with padding."""
    for c in (2048, 1024, 512, 256, 128):
        if n % c == 0:
            return c, 0
    return _LANE, (-n) % _LANE


def hard_swish_pallas(x):
    """Apply HardSwish elementwise to an arbitrarily-shaped array."""
    orig_shape = x.shape
    orig_dtype = x.dtype
    n = x.size

    C, pad = _choose_lane_width(n)

    x_flat = jnp.ravel(x)
    if pad:
        # Only pad to a multiple of the lane width (<= 127 elems); hardswish(0)=0
        # so zero padding is safe.
        x_flat = jnp.concatenate([x_flat, jnp.zeros((pad,), dtype=orig_dtype)])
    rows = (n + pad) // C
    x2d = x_flat.reshape(rows, C)

    # Block rows sized for ~_TARGET_BLOCK_BYTES per input block, rounded to a
    # multiple of 32 sublanes (covers f32/bf16/int8 sublane packing rules).
    itemsize = jnp.dtype(orig_dtype).itemsize
    tile_rows = max(32, (_TARGET_BLOCK_BYTES // (C * itemsize)) // 32 * 32)

    if rows <= tile_rows:
        # Small-input fast path: whole array in one block, no grid machinery.
        out2d = pl.pallas_call(
            _hardswish_kernel,
            out_shape=jax.ShapeDtypeStruct((rows, C), orig_dtype),
        )(x2d)
    else:
        grid = (pl.cdiv(rows, tile_rows),)  # partial last block is masked by Pallas
        out2d = pl.pallas_call(
            _hardswish_kernel,
            out_shape=jax.ShapeDtypeStruct((rows, C), orig_dtype),
            grid=grid,
            in_specs=[pl.BlockSpec((tile_rows, C), lambda i: (i, 0))],
            out_specs=pl.BlockSpec((tile_rows, C), lambda i: (i, 0)),
            compiler_params=pltpu.CompilerParams(
                dimension_semantics=("parallel",),  # shards across v7x's 2 TCs
            ),
        )(x2d)

    if pad:
        return out2d.reshape(-1)[:n].reshape(orig_shape)
    return out2d.reshape(orig_shape)


def hard_swish_ref(x):
    # Pure-JAX reference matching PyTorch: x * relu6(x + 3) / 6
    return x * jnp.clip(x + 3.0, 0.0, 6.0) / 6.0


if __name__ == "__main__":
    key = jax.random.PRNGKey(0)

    # Primary test: NCHW input consistent with the module (batch=2, channels=4, 16x16).
    x = jax.random.normal(key, (2, 4, 16, 16), dtype=jnp.float32) * 3.0
    out = jax.block_until_ready(hard_swish_pallas(x))
    ref = hard_swish_ref(x)
    assert out.shape == x.shape and out.dtype == x.dtype
    assert jnp.allclose(out, ref, atol=1e-6, rtol=1e-6), "mismatch vs reference (small)"

    # Secondary check: exercises the tiled multi-block grid path.
    x2 = jax.random.normal(jax.random.PRNGKey(1), (4, 16, 128, 128), dtype=jnp.float32) * 3.0
    out2 = jax.block_until_ready(hard_swish_pallas(x2))
    ref2 = hard_swish_ref(x2)
    assert out2.shape == x2.shape and out2.dtype == x2.dtype
    assert jnp.allclose(out2, ref2, atol=1e-6, rtol=1e-6), "mismatch vs reference (tiled)"

    print("KERNEL_OK")
</pallas_src>

<mosaic_0001>
module attributes {stable_mosaic.version = 11 : i64} {
  func.func @_hardswish_kernel(%arg0: memref<1x2048xf32, #tpu.memory_space<vmem>>, %arg1: memref<1x2048xf32, #tpu.memory_space<vmem>>) attributes {dimension_semantics = [], scalar_prefetch = 0 : i64, scratch_operands = 0 : i64, tpu.core_type = #tpu.core_type<tc>} {
    %c0 = arith.constant 0 : index
    %c0_0 = arith.constant 0 : index
    %0 = vector.load %arg0[%c0, %c0_0] : memref<1x2048xf32, #tpu.memory_space<vmem>>, vector<1x2048xf32>
    %cst = arith.constant 3.000000e+00 : f32
    %1 = vector.broadcast %cst : f32 to vector<1x2048xf32>
    %2 = arith.addf %0, %1 : vector<1x2048xf32>
    %cst_1 = arith.constant 0.000000e+00 : f32
    %cst_2 = arith.constant 6.000000e+00 : f32
    %3 = vector.broadcast %cst_1 : f32 to vector<1x2048xf32>
    %4 = arith.maximumf %3, %2 : vector<1x2048xf32>
    %5 = vector.broadcast %cst_2 : f32 to vector<1x2048xf32>
    %6 = arith.minimumf %5, %4 : vector<1x2048xf32>
    %cst_3 = arith.constant 0.166666672 : f32
    %7 = vector.broadcast %cst_3 : f32 to vector<1x2048xf32>
    %8 = arith.mulf %6, %7 : vector<1x2048xf32>
    %9 = arith.mulf %0, %8 : vector<1x2048xf32>
    %c0_4 = arith.constant 0 : index
    %c0_5 = arith.constant 0 : index
    %10 = vector.load %arg1[%c0_4, %c0_5] : memref<1x2048xf32, #tpu.memory_space<vmem>>, vector<1x2048xf32>
    tpu.vector_store %arg1[%c0_4, %c0_5], %9 {strides = array<i32>} : memref<1x2048xf32, #tpu.memory_space<vmem>>, vector<1x2048xf32>,
    return
  }
}

</mosaic_0001>

<llo_original>
// kernel: tpu_custom_call.1
$region0: #{tpu_custom_call.1}
  #allocation0 [shape = 'u32[]', space=smem, size = 0x4, offset = 0x4, fixed_abs, tag = 'smem constant byte address 0x4 - core index']
  #allocation1 [shape = 'u32[144,128]{1,0:T(1,128)}', space=vmem, size = 0x12000, scoped, tag = 'internal scratch']
  %s0 = inlined_call_operand.hbm [shape: f32[1,2048], index: 0, kind: input, shape index: {}]
  %s1 = inlined_call_operand.hbm [shape: f32[1,2048], index: 1, kind: output, shape index: {}]
  %s2 = sld [smem:[#allocation0]]
  $region18: #{tpu_custom_call.1} parent=0
    _
  %s4 = ssub.s32 1, %s2
  %s5 = scalar_select 0, %s4, %s2
  $region1: #{tpu_custom_call.1} parent=0
    #allocation2 [shape = 'u8[8192]{0}', space=vmem, size = 0x2000, scoped, tag = 'input window, operand 0, single buffered']
    #allocation3 [shape = 's32[1]{0}', space=sflag, size = 0x4, scoped, tag = 'scoped memory for tpu_custom_call.1']
    #allocation4 [shape = 's32[1]{0}', space=sflag, size = 0x4, scoped, tag = 'scoped memory for tpu_custom_call.1']
    #allocation5 [shape = 'u8[8192]{0}', space=vmem, size = 0x2000, scoped, tag = 'output window, operand 0, single buffered']
    %6 = vsyncpa [#allocation3], 0
    %7 = vsyncpa [#allocation4], 0
    // Predicated region
    $region2: #{tpu_custom_call.1} parent=1 // pred_check
      _
    $region3: #{tpu_custom_call.1} parent=1 // pred_check_branch
      %9 = sbr.rel (0) target = $region5
    $region4: #{tpu_custom_call.1} parent=1 // pred_region
      %s11 = ssub.s32 256, 256
      %12 = vsyncadd [#allocation3], %s11
      %s14 = sshll.u32 [#allocation2], 4
      %s15 = int_to_ptr.vmem [resolvable:$true] %s14
      %17 = dma.hbm_to_vmem [thread:$0]  %s0, 256, %s15, [#allocation3]
    $region5: #{tpu_custom_call.1} parent=1 // pred_fallthru
      _
    // Predicated region
    $region6: #{tpu_custom_call.1} parent=1 // pred_check
      _
    $region7: #{tpu_custom_call.1} parent=1 // pred_check_branch
      %19 = sbr.rel (0) target = $region9
    $region8: #{tpu_custom_call.1} parent=1 // pred_region
      %20 = dma.done [#allocation3], 256
    $region9: #{tpu_custom_call.1} parent=1 // pred_fallthru
      _
    %v21 = vld [vmem:[#allocation2] sm:$0xff]
    %v22 = vld [vmem:[#allocation2 + $0x8] sm:$0xff]
    %v23 = vadd.f32 %v21, 3.0
    %v24 = vadd.f32 %v22, 3.0
    %v25 = vmax.f32 %v23, 0.0
    %v26 = vmax.f32 %v24, 0.0
    %v27 = vmin.f32 %v25, 6.0
    %v28 = vmin.f32 %v26, 6.0
    %v29 = vmul.f32 %v27, 0.16666667
    %v30 = vmul.f32 %v28, 0.16666667
    %v31 = vmul.f32 %v21, %v29
    %v32 = vmul.f32 %v22, %v30
    %33 = vst [vmem:[#allocation5] sm:$0xff] %v31
    %34 = vst [vmem:[#allocation5 + $0x8] sm:$0xff] %v32
    // Predicated region
    $region10: #{tpu_custom_call.1} parent=1 // pred_check
      _
    $region11: #{tpu_custom_call.1} parent=1 // pred_check_branch
      %36 = sbr.rel (0) target = $region13
    $region12: #{tpu_custom_call.1} parent=1 // pred_region
      %s38 = ssub.s32 256, 256
      %39 = vsyncadd [#allocation4], %s38
      %s41 = sshll.u32 [#allocation5], 4
      %s42 = int_to_ptr.vmem [resolvable:$true] %s41
      %44 = dma.vmem_to_hbm [thread:$0]  %s42, 256, %s1, [#allocation4]
    $region13: #{tpu_custom_call.1} parent=1 // pred_fallthru
      _
    // Predicated region
    $region14: #{tpu_custom_call.1} parent=1 // pred_check
      _
    $region15: #{tpu_custom_call.1} parent=1 // pred_check_branch
      %46 = sbr.rel (0) target = $region17
    $region16: #{tpu_custom_call.1} parent=1 // pred_region
      %47 = dma.done [#allocation4], 256
    $region17: #{tpu_custom_call.1} parent=1 // pred_fallthru
      _
    %48 = vsyncpa [#allocation3], 1
    %49 = vsyncpa [#allocation4], 1

</llo_original>
